<compile_context>
chip_gen: v7x
topology: tpu7x:2x2x1
jax: 0.10.0
libtpu: 0.0.40
codegen_flags: <defaults>
</compile_context>

<pallas_src>
import numpy as np
import jax
import jax.numpy as jnp
from jax import lax
from jax.experimental import pallas as pl
from jax.experimental.pallas import tpu as pltpu


def _token_mapper_kernel(idx_ref, emb_ref, w_ref, bias_ref, out_ref):
    """One grid step: one-hot gather (MXU) -> projection (MXU) -> bias+pe add (VPU)."""
    tb, p, out_dims = out_ref.shape
    rows = tb * p
    vp = emb_ref.shape[0]

    # One-hot gather of `rows` rows of the VMEM-resident embedding table.
    idx = idx_ref[...]                                               # (rows, 1) int32
    onehot = lax.broadcasted_iota(jnp.int32, (rows, vp), 1) == idx   # (rows, Vp) bool
    mu = jnp.dot(onehot.astype(emb_ref.dtype), emb_ref[...],
                 preferred_element_type=jnp.float32)                 # (rows, D) f32

    # Projection, f32 accumulation on the MXU.
    acc = jnp.dot(mu.astype(w_ref.dtype), w_ref[...],
                  preferred_element_type=jnp.float32)                # (rows, OUT) f32

    # Epilogue: broadcast-add the fused (b_proj + pe) over the batch sub-tile.
    out3 = acc.reshape(tb, p, out_dims) + bias_ref[...].astype(jnp.float32)
    out_ref[...] = out3.astype(out_ref.dtype)


def _pick_row_tile(batch, num_parts, itemsize, max_rows=512):
    """Largest batch sub-tile with an aligned row count; prefer >= 2 grid steps."""
    granule = max(8, 32 // max(itemsize, 1))   # sublane packing: 8 f32, 16 bf16, 32 i8
    divisors = [d for d in range(1, batch + 1) if batch % d == 0]
    for tb in sorted(divisors, reverse=True):  # >= 2 grid steps (pipeline + v7x 2xTC)
        rows = tb * num_parts
        if tb < batch and rows <= max_rows and rows % granule == 0:
            return tb
    for tb in sorted(divisors, reverse=True):  # fall back: any aligned divisor
        rows = tb * num_parts
        if rows <= max_rows and rows % granule == 0:
            return tb
    return batch                               # single step; block == full array dims


def token_mapper_forward(hashes, embedding, w_proj_t, b_proj, pe,
                         num_k_per_part, max_rows_per_block=512):
    """Pallas implementation of TokenMapper.forward (default config).

    hashes:     (B, P) int
    embedding:  (V, vae_dims) with V = (num_k_per_part + 1) * P
    w_proj_t:   (vae_dims, out_dims)   -- torch Linear weight, pre-transposed
    b_proj:     (out_dims,)
    pe:         (P, out_dims)
    returns:    (B, P, out_dims)
    """
    B, P = hashes.shape
    V, D = embedding.shape
    OUT = w_proj_t.shape[1]
    assert w_proj_t.shape == (D, OUT)
    assert pe.shape == (P, OUT)
    assert b_proj.shape == (OUT,)

    # Flat gather indices idx[b, p] = hashes[b, p] + p * (K + 1), as a column so the
    # in-kernel compare broadcasts along lanes.  (An out-of-range hash produces an
    # all-zero one-hot row instead of nn.Embedding's hard error.)
    offset = jnp.arange(P, dtype=jnp.int32) * (num_k_per_part + 1)
    idx = (hashes.astype(jnp.int32) + offset[None, :]).reshape(B * P, 1)

    # Pad the table row count to a multiple of 128 so the one-hot operand is lane-dense.
    Vp = ((V + 127) // 128) * 128
    emb_pad = embedding if Vp == V else jnp.pad(embedding, ((0, Vp - V), (0, 0)))

    # Fold pe into the projection bias: one small resident (P, OUT) epilogue operand.
    bias_pe = b_proj[None, :].astype(jnp.float32) + pe.astype(jnp.float32)

    itemsize = jnp.dtype(embedding.dtype).itemsize
    tb = _pick_row_tile(B, P, itemsize, max_rows_per_block)
    rows = tb * P
    n_blocks = B // tb

    # VMEM budget (operands double-buffered by the pipeline): gate residency + set limit.
    est = (2 * (Vp * D + D * OUT) * itemsize          # table + weight
           + 2 * P * OUT * 4                          # fused bias + pe
           + 2 * rows * 4                             # idx tile
           + 2 * rows * OUT * itemsize                # output tile
           + rows * (Vp + D + OUT) * 4)               # in-kernel intermediates
    if est > (56 << 20):
        # TODO(synk): for very large tables, fall back to an HBM-resident table with
        # double-buffered batched DMA gathers instead of the VMEM-resident path.
        raise ValueError("embedding table too large for the VMEM-resident kernel")
    vmem_limit = int(min(max(2 * est, 32 << 20), 60 << 20))

    out = pl.pallas_call(
        _token_mapper_kernel,
        out_shape=jax.ShapeDtypeStruct((B, P, OUT), embedding.dtype),
        grid_spec=pltpu.PrefetchScalarGridSpec(
            num_scalar_prefetch=0,
            grid=(n_blocks,),
            in_specs=[
                pl.BlockSpec((rows, 1), lambda i: (i, 0)),   # gather indices (per tile)
                pl.BlockSpec((Vp, D), lambda i: (0, 0)),     # embedding table, resident
                pl.BlockSpec((D, OUT), lambda i: (0, 0)),    # projection weight, resident
                pl.BlockSpec((P, OUT), lambda i: (0, 0)),    # fused bias + pe, resident
            ],
            out_specs=pl.BlockSpec((tb, P, OUT), lambda i: (i, 0, 0)),
        ),
        compiler_params=pltpu.CompilerParams(
            dimension_semantics=("parallel",),   # independent row tiles (v7x dual-TC)
            vmem_limit_bytes=vmem_limit,
        ),
    )(idx, emb_pad, w_proj_t, bias_pe)

    return out


if __name__ == "__main__":
    # Small deterministic example consistent with TokenMapper defaults.
    B = 4              # batch
    P = 8              # num_parts
    K = 16             # num_k_per_part
    D = 128            # vae_dims
    OUT = 256          # out_dims
    V = (K + 1) * P    # embedding rows

    key = jax.random.PRNGKey(0)
    k_emb, k_w, k_b, k_pe, k_hash = jax.random.split(key, 5)

    # Parameters mirroring the PyTorch init.
    embedding = 0.01 * jax.random.normal(k_emb, (V, D), dtype=jnp.float32)
    bound = 1.0 / np.sqrt(D)
    w_proj_t = jax.random.uniform(k_w, (D, OUT), jnp.float32, -bound, bound)
    b_proj = jax.random.uniform(k_b, (OUT,), jnp.float32, -bound, bound)
    pe = jax.random.normal(k_pe, (P, OUT), dtype=jnp.float32)
    hashes = jax.random.randint(k_hash, (B, P), 0, K + 1, dtype=jnp.int32)

    out = token_mapper_forward(hashes, embedding, w_proj_t, b_proj, pe, K)
    out = jax.block_until_ready(out)

    # Pure-JAX reference of the same forward pass.
    offset = jnp.arange(P, dtype=jnp.int32) * (K + 1)
    idx2d = hashes + offset[None, :]
    orig_mu = jnp.take(embedding, idx2d.reshape(-1), axis=0).reshape(B, P, D)
    ref = (jnp.einsum("bpd,do->bpo", orig_mu, w_proj_t,
                      precision=jax.lax.Precision.HIGHEST)
           + b_proj[None, None, :] + pe[None, :, :])

    np.testing.assert_allclose(np.asarray(out), np.asarray(ref),
                               rtol=1e-3, atol=1e-3)
    print("KERNEL_OK")
</pallas_src>

<mosaic_0001>
module attributes {stable_mosaic.version = 11 : i64} {
  func.func @_token_mapper_kernel(%arg0: i32, %arg1: memref<16x1xi32, #tpu.memory_space<vmem>>, %arg2: memref<256x128xf32, #tpu.memory_space<vmem>>, %arg3: memref<128x256xf32, #tpu.memory_space<vmem>>, %arg4: memref<8x256xf32, #tpu.memory_space<vmem>>, %arg5: memref<2x8x256xf32, #tpu.memory_space<vmem>>) attributes {dimension_semantics = [#tpu.dimension_semantics<parallel>], iteration_bounds = array<i64: 2>, scalar_prefetch = 0 : i64, scratch_operands = 0 : i64, tpu.core_type = #tpu.core_type<tc>, window_params = [{transform_indices = @transform_0, window_bounds = array<i64: 16, 1>}, {pipeline_mode = #tpu.pipeline_mode<synchronous>, transform_indices = @transform_1, window_bounds = array<i64: 256, 128>}, {pipeline_mode = #tpu.pipeline_mode<synchronous>, transform_indices = @transform_2, window_bounds = array<i64: 128, 256>}, {pipeline_mode = #tpu.pipeline_mode<synchronous>, transform_indices = @transform_3, window_bounds = array<i64: 8, 256>}, {transform_indices = @transform_4, window_bounds = array<i64: 2, 8, 256>}]} {
    %c0 = arith.constant 0 : index
    %c0_0 = arith.constant 0 : index
    %0 = vector.load %arg1[%c0, %c0_0] : memref<16x1xi32, #tpu.memory_space<vmem>>, vector<16x1xi32>
    %1 = tpu.iota {dimensions = array<i32: 1>} : vector<16x256xi32>
    %2 = vector.broadcast %0 : vector<16x1xi32> to vector<16x256xi32>
    %3 = arith.cmpi eq, %1, %2 : vector<16x256xi32>
    %4 = arith.extui %3 : vector<16x256xi1> to vector<16x256xi32>
    %5 = arith.sitofp %4 : vector<16x256xi32> to vector<16x256xf32>
    %c0_1 = arith.constant 0 : index
    %c0_2 = arith.constant 0 : index
    %6 = vector.load %arg2[%c0_1, %c0_2] : memref<256x128xf32, #tpu.memory_space<vmem>>, vector<256x128xf32>
    %cst = arith.constant dense<0.000000e+00> : vector<16x128xf32>
    %7 = tpu.matmul %5, %6, %cst {dimension_numbers = #tpu.dot_dimension_numbers<[1], [0], [0], [1], [0, 0, 1, 1], [], []>} : vector<16x256xf32>, vector<256x128xf32>, vector<16x128xf32> -> vector<16x128xf32>
    %c0_3 = arith.constant 0 : index
    %c0_4 = arith.constant 0 : index
    %8 = vector.load %arg3[%c0_3, %c0_4] : memref<128x256xf32, #tpu.memory_space<vmem>>, vector<128x256xf32>
    %cst_5 = arith.constant dense<0.000000e+00> : vector<16x256xf32>
    %9 = tpu.matmul %7, %8, %cst_5 {dimension_numbers = #tpu.dot_dimension_numbers<[1], [0], [0], [1], [0, 0, 1, 1], [], []>} : vector<16x128xf32>, vector<128x256xf32>, vector<16x256xf32> -> vector<16x256xf32>
    %10 = vector.shape_cast %9 : vector<16x256xf32> to vector<2x8x256xf32>
    %c0_6 = arith.constant 0 : index
    %c0_7 = arith.constant 0 : index
    %11 = vector.load %arg4[%c0_6, %c0_7] : memref<8x256xf32, #tpu.memory_space<vmem>>, vector<8x256xf32>
    %12 = vector.shape_cast %11 : vector<8x256xf32> to vector<1x8x256xf32>
    %13 = vector.broadcast %12 : vector<1x8x256xf32> to vector<2x8x256xf32>
    %14 = arith.addf %10, %13 : vector<2x8x256xf32>
    %c0_8 = arith.constant 0 : index
    %c0_9 = arith.constant 0 : index
    %c0_10 = arith.constant 0 : index
    %15 = vector.load %arg5[%c0_8, %c0_9, %c0_10] : memref<2x8x256xf32, #tpu.memory_space<vmem>>, vector<2x8x256xf32>
    tpu.vector_store %arg5[%c0_8, %c0_9, %c0_10], %14 {strides = array<i32>} : memref<2x8x256xf32, #tpu.memory_space<vmem>>, vector<2x8x256xf32>,
    return
  }
  func.func @transform_0(%arg0: i32) -> (i32, i32) {
    %c0_i32 = arith.constant 0 : i32
    %c0_i32_0 = arith.constant 0 : i32
    return %arg0, %c0_i32 : i32, i32
  }
  func.func @transform_1(%arg0: i32) -> (i32, i32) {
    %c0_i32 = arith.constant 0 : i32
    %c0_i32_0 = arith.constant 0 : i32
    %c0_i32_1 = arith.constant 0 : i32
    return %c0_i32, %c0_i32_0 : i32, i32
  }
  func.func @transform_2(%arg0: i32) -> (i32, i32) {
    %c0_i32 = arith.constant 0 : i32
    %c0_i32_0 = arith.constant 0 : i32
    %c0_i32_1 = arith.constant 0 : i32
    return %c0_i32, %c0_i32_0 : i32, i32
  }
  func.func @transform_3(%arg0: i32) -> (i32, i32) {
    %c0_i32 = arith.constant 0 : i32
    %c0_i32_0 = arith.constant 0 : i32
    %c0_i32_1 = arith.constant 0 : i32
    return %c0_i32, %c0_i32_0 : i32, i32
  }
  func.func @transform_4(%arg0: i32) -> (i32, i32, i32) {
    %c0_i32 = arith.constant 0 : i32
    %c0_i32_0 = arith.constant 0 : i32
    %c0_i32_1 = arith.constant 0 : i32
    return %arg0, %c0_i32, %c0_i32_0 : i32, i32, i32
  }
}

</mosaic_0001>

<llo_original>
// kernel: tpu_custom_call.1
$region0: #{tpu_custom_call.1}
  #allocation0 [shape = 'u32[]', space=smem, size = 0x4, offset = 0x4, fixed_abs, tag = 'smem constant byte address 0x4 - core index']
  #allocation1 [shape = 'u32[144,128]{1,0:T(1,128)}', space=vmem, size = 0x12000, scoped, tag = 'internal scratch']
  %s0 = inlined_call_operand.vmem [shape: s32[32,1], index: 0, kind: input, shape index: {}]
  %s1 = inlined_call_operand.hbm [shape: f32[256,128], index: 1, kind: input, shape index: {}]
  %s2 = inlined_call_operand.hbm [shape: f32[128,256], index: 2, kind: input, shape index: {}]
  %s3 = inlined_call_operand.vmem [shape: f32[8,256], index: 3, kind: input, shape index: {}]
  %s4 = inlined_call_operand.hbm [shape: f32[4,8,256], index: 4, kind: output, shape index: {}]
  %s5 = sld [smem:[#allocation0]]
  $region57: #{tpu_custom_call.1} parent=0
    _
  %s7 = ssub.s32 1, %s5
  %s8 = scalar_select 0, %s7, %s5
  $region1: #{tpu_custom_call.1} parent=0
    #allocation2 [shape = 'u8[131072]{0}', space=vmem, size = 0x20000, scoped, tag = 'input window, operand 1, single buffered']
    #allocation3 [shape = 's32[2]{0}', space=sflag, size = 0x8, scoped, tag = 'scoped memory for tpu_custom_call.1']
    #allocation4 [shape = 's32[2]{0}', space=sflag, size = 0x8, scoped, tag = 'scoped memory for tpu_custom_call.1']
    #allocation5 [shape = 'u8[131072]{0}', space=vmem, size = 0x20000, scoped, tag = 'input window, operand 2, single buffered']
    #allocation6 [shape = 's32[1]{0}', space=sflag, size = 0x4, scoped, tag = 'scoped memory for tpu_custom_call.1']
    #allocation7 [shape = 'u8[32768]{0}', space=vmem, size = 0x8000, scoped, tag = 'output window, operand 0']
    %9 = vsyncpa [#allocation3], 0
    %10 = vsyncpa [#allocation6], 0
    %11 = vsyncpa [#allocation4], 0
    %s12 = scalar_lea.sflag [#allocation4], 1
    %13 = vsyncpa %s12, 0
    loop: start=0, step=1, limit=4
    $region2: #{tpu_custom_call.1} parent=1 // loop_pre_header
      _
    $region3: #{tpu_custom_call.1} parent=1 // loop_header
      %s15 = sphi 0, %s19
      %p16 = scmp.ge.s32.totalorder %s15, 4
      %s25 = sphi 0, %s27
      %s28 = sphi 0, %s25
      %s29 = sphi 0, %s28
      %s45 = sphi 0, %s29
      %s49 = sphi 0, %s49
      %s51 = sphi 0, %s49
      %s52 = sphi 0, %s51
      %s66 = sphi 0, %s52
      %s70 = sphi 0, %s70
      %s72 = sphi 0, %s70
      %s73 = sphi 0, %s72
      %s87 = sphi 0, %s73
      %s91 = sphi 0, %s91
      %s93 = sphi 0, %s91
      %s94 = sphi 0, %s93
      %s108 = sphi 0, %s94
      %s114 = sphi 0, %s116
      %s117 = sphi 0, %s114
      %s118 = sphi 0, %s117
      %s134 = sphi 0, %s118
    $region4: #{tpu_custom_call.1} parent=1 // loop_header_branch
      %18 = sbr.rel (%p16) target = $region8
    $region5: #{tpu_custom_call.1} parent=1 // loop_body
      %s20 = ssub.s32 %s15, 1
      %s21 = ssub.s32 %s15, 2
      %s22 = sadd.s32 %s15, 1
      %s23 = ssub.s32 %s15, %s22
      %p24 = scmp.eq.s32.totalorder %s23, 0
      %s26 = sadd.s32 %s25, 1
      %s27 = scalar_select %p24, %s25, %s26
      %p30 = pneg %p24
      %p31 = scmp.eq.s32.totalorder %s15, 1
      %p32 = por %p30, %p31
      %p33 = scmp.ne.s32.totalorder %s25, %s28
      %p34 = scmp.eq.s32.totalorder %s15, 0
      %p35 = por %p33, %p34
      %p36 = scmp.ne.s32.totalorder %s25, %s28
      %p37 = scmp.eq.s32.totalorder %s20, 1
      %p38 = por %p36, %p37
      %p39 = scmp.ne.s32.totalorder %s28, %s29
      %p40 = scmp.eq.s32.totalorder %s20, 0
      %p41 = por %p39, %p40
      %p42 = scmp.ne.s32.totalorder %s28, %s29
      %p43 = scmp.eq.s32.totalorder %s21, 1
      %p44 = por %p42, %p43
      %p46 = scmp.ne.s32.totalorder %s29, %s45
      %p47 = scmp.eq.s32.totalorder %s21, 0
      %p48 = por %p46, %p47
      %s50 = sadd.s32 %s49, 1
      %p53 = scmp.eq.s32.totalorder %s15, 1
      %p54 = scmp.ne.s32.totalorder %s49, %s51
      %p55 = scmp.eq.s32.totalorder %s15, 0
      %p56 = por %p54, %p55
      %p57 = scmp.ne.s32.totalorder %s49, %s51
      %p58 = scmp.eq.s32.totalorder %s20, 1
      %p59 = por %p57, %p58
      %p60 = scmp.ne.s32.totalorder %s51, %s52
      %p61 = scmp.eq.s32.totalorder %s20, 0
      %p62 = por %p60, %p61
      %p63 = scmp.ne.s32.totalorder %s51, %s52
      %p64 = scmp.eq.s32.totalorder %s21, 1
      %p65 = por %p63, %p64
      %p67 = scmp.ne.s32.totalorder %s52, %s66
      %p68 = scmp.eq.s32.totalorder %s21, 0
      %p69 = por %p67, %p68
      %s71 = sadd.s32 %s70, 1
      %p74 = scmp.eq.s32.totalorder %s15, 1
      %p75 = scmp.ne.s32.totalorder %s70, %s72
      %p76 = scmp.eq.s32.totalorder %s15, 0
      %p77 = por %p75, %p76
      %p78 = scmp.ne.s32.totalorder %s70, %s72
      %p79 = scmp.eq.s32.totalorder %s20, 1
      %p80 = por %p78, %p79
      %p81 = scmp.ne.s32.totalorder %s72, %s73
      %p82 = scmp.eq.s32.totalorder %s20, 0
      %p83 = por %p81, %p82
      %p84 = scmp.ne.s32.totalorder %s72, %s73
      %p85 = scmp.eq.s32.totalorder %s21, 1
      %p86 = por %p84, %p85
      %p88 = scmp.ne.s32.totalorder %s73, %s87
      %p89 = scmp.eq.s32.totalorder %s21, 0
      %p90 = por %p88, %p89
      %s92 = sadd.s32 %s91, 1
      %p95 = scmp.eq.s32.totalorder %s15, 1
      %p96 = scmp.ne.s32.totalorder %s91, %s93
      %p97 = scmp.eq.s32.totalorder %s15, 0
      %p98 = por %p96, %p97
      %p99 = scmp.ne.s32.totalorder %s91, %s93
      %p100 = scmp.eq.s32.totalorder %s20, 1
      %p101 = por %p99, %p100
      %p102 = scmp.ne.s32.totalorder %s93, %s94
      %p103 = scmp.eq.s32.totalorder %s20, 0
      %p104 = por %p102, %p103
      %p105 = scmp.ne.s32.totalorder %s93, %s94
      %p106 = scmp.eq.s32.totalorder %s21, 1
      %p107 = por %p105, %p106
      %p109 = scmp.ne.s32.totalorder %s94, %s108
      %p110 = scmp.eq.s32.totalorder %s21, 0
      %p111 = por %p109, %p110
      %s112 = ssub.s32 %s15, %s22
      %p113 = scmp.eq.s32.totalorder %s112, 0
      %s115 = sadd.s32 %s114, 1
      %s116 = scalar_select %p113, %s114, %s115
      %p119 = pneg %p113
      %p120 = scmp.eq.s32.totalorder %s15, 1
      %p121 = por %p119, %p120
      %p122 = scmp.ne.s32.totalorder %s114, %s117
      %p123 = scmp.eq.s32.totalorder %s15, 0
      %p124 = por %p122, %p123
      %p125 = scmp.ne.s32.totalorder %s114, %s117
      %p126 = scmp.eq.s32.totalorder %s20, 1
      %p127 = por %p125, %p126
      %p128 = scmp.ne.s32.totalorder %s117, %s118
      %p129 = scmp.eq.s32.totalorder %s20, 0
      %p130 = por %p128, %p129
      %p131 = scmp.ne.s32.totalorder %s117, %s118
      %p132 = scmp.eq.s32.totalorder %s21, 1
      %p133 = por %p131, %p132
      %p135 = scmp.ne.s32.totalorder %s118, %s134
      %p136 = scmp.eq.s32.totalorder %s21, 0
      %p137 = por %p135, %p136
      %p138 = scmp.le.s32.totalorder 1, %s15
      %p139 = scmp.lt.s32.totalorder %s15, 3
      %p140 = pnand %p138, %p139
      %p141 = pneg %p140
      // Predicated region
      $region9: #{tpu_custom_call.1} parent=5 // pred_check
        _
      $region10: #{tpu_custom_call.1} parent=5 // pred_check_branch
        %143 = sbr.rel (%p140) target = $region12
      $region11: #{tpu_custom_call.1} parent=5 // pred_region
        %s144 = ssub.s32 %s15, 1
        // Predicated region
        $region13: #{tpu_custom_call.1} parent=11 // pred_check
          %p145 = pneg %p62
        $region14: #{tpu_custom_call.1} parent=11 // pred_check_branch
          %147 = sbr.rel (%p145) target = $region16
        $region15: #{tpu_custom_call.1} parent=11 // pred_region
          %s149 = ssub.s32 4096, 4096
          %150 = vsyncadd [#allocation3], %s149
          %s151 = sshll.u32 [#allocation2], 4
          %s152 = int_to_ptr.vmem [resolvable:$true] %s151
          %157 = dma.hbm_to_vmem [thread:$0]  %s1, 4096, %s152, [#allocation3], 128, 128, 8
        $region16: #{tpu_custom_call.1} parent=11 // pred_fallthru
          _
        // Predicated region
        $region17: #{tpu_custom_call.1} parent=11 // pred_check
          %p158 = pneg %p83
        $region18: #{tpu_custom_call.1} parent=11 // pred_check_branch
          %160 = sbr.rel (%p158) target = $region20
        $region19: #{tpu_custom_call.1} parent=11 // pred_region
          %s162 = ssub.s32 4096, 4096
          %163 = vsyncadd [#allocation6], %s162
          %s164 = sshll.u32 [#allocation5], 4
          %s165 = int_to_ptr.vmem [resolvable:$true] %s164
          %170 = dma.hbm_to_vmem [thread:$0]  %s2, 4096, %s165, [#allocation6], 256, 256, 16
        $region20: #{tpu_custom_call.1} parent=11 // pred_fallthru
          _
        // Predicated region
        $region21: #{tpu_custom_call.1} parent=11 // pred_check
          %p171 = pneg %p104
        $region22: #{tpu_custom_call.1} parent=11 // pred_check_branch
          %173 = sbr.rel (%p171) target = $region24
        $region23: #{tpu_custom_call.1} parent=11 // pred_region
          _
        $region24: #{tpu_custom_call.1} parent=11 // pred_fallthru
          _
      $region12: #{tpu_custom_call.1} parent=5 // pred_fallthru
        _
      %p174 = scmp.lt.s32.totalorder %s15, 2
      // Predicated region
      $region25: #{tpu_custom_call.1} parent=5 // pred_check
        %p175 = pneg %p174
      $region26: #{tpu_custom_call.1} parent=5 // pred_check_branch
        %177 = sbr.rel (%p175) target = $region28
      $region27: #{tpu_custom_call.1} parent=5 // pred_region
        // Predicated region
        $region29: #{tpu_custom_call.1} parent=27 // pred_check
          %p178 = pneg %p35
        $region30: #{tpu_custom_call.1} parent=27 // pred_check_branch
          %180 = sbr.rel (%p178) target = $region32
        $region31: #{tpu_custom_call.1} parent=27 // pred_region
          %s181 = smul.u32 2, %s15
          %p182 = scmp.lt.s32.totalorder %s181, 3
          %s183 = scalar_select %p182, %s181, 3
          %s184 = smul.addr %s183, 8
          %s185 = scalar_lea.vmem %s0, %s184
          %s186 = smul.u32 2, %s15
        $region32: #{tpu_custom_call.1} parent=27 // pred_fallthru
          _
      $region28: #{tpu_custom_call.1} parent=5 // pred_fallthru
        _
      %p187 = scmp.le.s32.totalorder 1, %s15
      %p188 = scmp.lt.s32.totalorder %s15, 3
      %p189 = pnand %p187, %p188
      %p190 = pneg %p189
      // Predicated region
      $region33: #{tpu_custom_call.1} parent=5 // pred_check
        _
      $region34: #{tpu_custom_call.1} parent=5 // pred_check_branch
        %192 = sbr.rel (%p189) target = $region36
      $region35: #{tpu_custom_call.1} parent=5 // pred_region
        %s193 = ssub.s32 %s15, 1
        // Predicated region
        $region37: #{tpu_custom_call.1} parent=35 // pred_check
          %p194 = pneg %p62
        $region38: #{tpu_custom_call.1} parent=35 // pred_check_branch
          %196 = sbr.rel (%p194) target = $region40
        $region39: #{tpu_custom_call.1} parent=35 // pred_region
          %197 = dma.done [#allocation3], 4096
        $region40: #{tpu_custom_call.1} parent=35 // pred_fallthru
          _
        // Predicated region
        $region41: #{tpu_custom_call.1} parent=35 // pred_check
          %p198 = pneg %p83
        $region42: #{tpu_custom_call.1} parent=35 // pred_check_branch
          %200 = sbr.rel (%p198) target = $region44
        $region43: #{tpu_custom_call.1} parent=35 // pred_region
          %201 = dma.done [#allocation6], 4096
        $region44: #{tpu_custom_call.1} parent=35 // pred_fallthru
          _
        %s202 = smul.u32 2, %s20
        %p203 = scmp.lt.s32.totalorder %s202, 3
        %s204 = scalar_select %p203, %s202, 3
        %s205 = smul.addr %s204, 8
        %s206 = scalar_lea.vmem %s0, %s205
        %p207 = pneg %p41
        %p208 = pneg %p38
        %p209 = pneg %p62
        %p210 = pneg %p59
        %p211 = pneg %p83
        %p212 = pneg %p80
        %p213 = pneg %p104
        %p214 = pneg %p101
        %p215 = pneg %p130
        %p216 = pneg %p127
        %s217 = sand.u32 %s117, 1
        %s218 = scalar_lea.sflag [#allocation4], %s217
        %s219 = sand.u32 %s117, 1
        %s220 = smul.addr %s219, 32
        %s221 = scalar_lea.vmem [#allocation7], %s220
        %s222 = smul.u32 2, %s20
        %p223 = scmp.lt.s32.totalorder %s222, 3
        %s224 = scalar_select %p223, %s222, 3
        %s225 = smul.addr %s224, 8
        %s226 = scalar_lea.vmem %s0, %s225
        %s227 = smul.u32 2, %s20
        %s228 = smul.u32 2, %s20
        %v229 = vld [vmem:[%s226] sm:$0xff]
        %v230 = vld [vmem:[%s226 + $0x8] sm:$0xff]
        %v231 = vlaneseq
        %v232 = vand.u32 %v231, 127
        %v233 = vadd.s32 %v232, 128
        %234 = vset.pattern.permute.xlu0 0
        %235 = vperm.xlu0 %234, %v229
        %v236 = vpop.permute.xlu0 %235
        %237 = vset.pattern.permute.xlu0 0
        %238 = vperm.xlu0 %237, %v230
        %v239 = vpop.permute.xlu0 %238
        %vm240 = vcmp.eq.s32.totalorder %v232, %v236
        %vm241 = vcmp.eq.s32.totalorder %v233, %v236
        %vm242 = vcmp.eq.s32.totalorder %v232, %v239
        %vm243 = vcmp.eq.s32.totalorder %v233, %v239
        %v244 = vsel %vm240, 1, 0
        %v245 = vsel %vm241, 1, 0
        %v246 = vsel %vm242, 1, 0
        %v247 = vsel %vm243, 1, 0
        %v248 = vcvt.s32.f32 %v244
        %v249 = vcvt.s32.f32 %v245
        %v250 = vcvt.s32.f32 %v246
        %v251 = vcvt.s32.f32 %v247
        %v252 = vld [vmem:[#allocation2] sm:$0xff]
        %v253 = vld [vmem:[#allocation2 + $0x8] sm:$0xff]
        %v254 = vld [vmem:[#allocation2 + $0x10] sm:$0xff]
        %v255 = vld [vmem:[#allocation2 + $0x18] sm:$0xff]
        %v256 = vld [vmem:[#allocation2 + $0x20] sm:$0xff]
        %v257 = vld [vmem:[#allocation2 + $0x28] sm:$0xff]
        %v258 = vld [vmem:[#allocation2 + $0x30] sm:$0xff]
        %v259 = vld [vmem:[#allocation2 + $0x38] sm:$0xff]
        %v260 = vld [vmem:[#allocation2 + $0x40] sm:$0xff]
        %v261 = vld [vmem:[#allocation2 + $0x48] sm:$0xff]
        %v262 = vld [vmem:[#allocation2 + $0x50] sm:$0xff]
        %v263 = vld [vmem:[#allocation2 + $0x58] sm:$0xff]
        %v264 = vld [vmem:[#allocation2 + $0x60] sm:$0xff]
        %v265 = vld [vmem:[#allocation2 + $0x68] sm:$0xff]
        %v266 = vld [vmem:[#allocation2 + $0x70] sm:$0xff]
        %v267 = vld [vmem:[#allocation2 + $0x78] sm:$0xff]
        %v268 = vld [vmem:[#allocation2 + $0x80] sm:$0xff]
        %v269 = vld [vmem:[#allocation2 + $0x88] sm:$0xff]
        %v270 = vld [vmem:[#allocation2 + $0x90] sm:$0xff]
        %v271 = vld [vmem:[#allocation2 + $0x98] sm:$0xff]
        %v272 = vld [vmem:[#allocation2 + $0xa0] sm:$0xff]
        %v273 = vld [vmem:[#allocation2 + $0xa8] sm:$0xff]
        %v274 = vld [vmem:[#allocation2 + $0xb0] sm:$0xff]
        %v275 = vld [vmem:[#allocation2 + $0xb8] sm:$0xff]
        %v276 = vld [vmem:[#allocation2 + $0xc0] sm:$0xff]
        %v277 = vld [vmem:[#allocation2 + $0xc8] sm:$0xff]
        %v278 = vld [vmem:[#allocation2 + $0xd0] sm:$0xff]
        %v279 = vld [vmem:[#allocation2 + $0xd8] sm:$0xff]
        %v280 = vld [vmem:[#allocation2 + $0xe0] sm:$0xff]
        %v281 = vld [vmem:[#allocation2 + $0xe8] sm:$0xff]
        %v282 = vld [vmem:[#allocation2 + $0xf0] sm:$0xff]
        %v283 = vld [vmem:[#allocation2 + $0xf8] sm:$0xff]
        %284 = vmatprep.subr.mxu0 0.0
        %285 = vmatpush1.msra.mxu0 %v252
        %286 = vmatprep.subr.mxu0 0.0
        %287 = vmatpush1.msra.mxu0 %v253
        %288 = vmatprep.subr.mxu0 0.0
        %289 = vmatpush1.msra.mxu0 %v254
        %290 = vmatprep.subr.mxu0 0.0
        %291 = vmatpush1.msra.mxu0 %v255
        %292 = vmatprep.subr.mxu0 0.0
        %293 = vmatpush1.msra.mxu0 %v256
        %294 = vmatprep.subr.mxu0 0.0
        %295 = vmatpush1.msra.mxu0 %v257
        %296 = vmatprep.subr.mxu0 0.0
        %297 = vmatpush1.msra.mxu0 %v258
        %298 = vmatprep.subr.mxu0 0.0
        %299 = vmatpush1.msra.mxu0 %v259
        %300 = vmatprep.subr.mxu0 0.0
        %301 = vmatpush1.msra.mxu0 %v260
        %302 = vmatprep.subr.mxu0 0.0
        %303 = vmatpush1.msra.mxu0 %v261
        %304 = vmatprep.subr.mxu0 0.0
        %305 = vmatpush1.msra.mxu0 %v262
        %306 = vmatprep.subr.mxu0 0.0
        %307 = vmatpush1.msra.mxu0 %v263
        %308 = vmatprep.subr.mxu0 0.0
        %309 = vmatpush1.msra.mxu0 %v264
        %310 = vmatprep.subr.mxu0 0.0
        %311 = vmatpush1.msra.mxu0 %v265
        %312 = vmatprep.subr.mxu0 0.0
        %313 = vmatpush1.msra.mxu0 %v266
        %314 = vmatprep.subr.mxu0 0.0
        %315 = vmatpush1.msra.mxu0 %v267
        %316 = vmatprep.subr.mxu0 0.0
        %317 = vmatpush1.msra.mxu0 %v268
        %318 = vmatprep.subr.mxu0 0.0
        %319 = vmatpush1.msra.mxu0 %v269
        %320 = vmatprep.subr.mxu0 0.0
        %321 = vmatpush1.msra.mxu0 %v270
        %322 = vmatprep.subr.mxu0 0.0
        %323 = vmatpush1.msra.mxu0 %v271
        %324 = vmatprep.subr.mxu0 0.0
        %325 = vmatpush1.msra.mxu0 %v272
        %326 = vmatprep.subr.mxu0 0.0
        %327 = vmatpush1.msra.mxu0 %v273
        %328 = vmatprep.subr.mxu0 0.0
        %329 = vmatpush1.msra.mxu0 %v274
        %330 = vmatprep.subr.mxu0 0.0
        %331 = vmatpush1.msra.mxu0 %v275
        %332 = vmatprep.subr.mxu0 0.0
        %333 = vmatpush1.msra.mxu0 %v276
        %334 = vmatprep.subr.mxu0 0.0
        %335 = vmatpush1.msra.mxu0 %v277
        %336 = vmatprep.subr.mxu0 0.0
        %337 = vmatpush1.msra.mxu0 %v278
        %338 = vmatprep.subr.mxu0 0.0
        %339 = vmatpush1.msra.mxu0 %v279
        %340 = vmatprep.subr.mxu0 0.0
        %341 = vmatpush1.msra.mxu0 %v280
        %342 = vmatprep.subr.mxu0 0.0
        %343 = vmatpush1.msra.mxu0 %v281
        %344 = vmatprep.subr.mxu0 0.0
        %345 = vmatpush1.msra.mxu0 %v282
        %346 = vmatprep.subr.mxu0 0.0
        %347 = vmatpush1.msra.mxu0 %v283
        %348 = vmatprep.mubr.f32.mxu0 %v249
        %349 = vmatmul.mubr.f32.gmra.mrb[0].mxu0 %v248
        %v350 = vpop.f32.mrb[0].mxu0
        %v351 = vadd.f32 0.0, %v350
        %v352 = vpop.f32.mrb[0].mxu0
        %353 = vmatprep.mubr.f32.mxu0 %v251
        %354 = vmatmul.mubr.f32.gmra.mrb[0].mxu0 %v250
        %v355 = vpop.f32.mrb[0].mxu0
        %v356 = vadd.f32 0.0, %v355
        %v357 = vpop.f32.mrb[0].mxu0
        %358 = vdwg.mxu0
        %v359 = vld [vmem:[#allocation5] sm:$0xff]
        %v360 = vld [vmem:[#allocation5 + $0x8] sm:$0xff]
        %v361 = vld [vmem:[#allocation5 + $0x10] sm:$0xff]
        %v362 = vld [vmem:[#allocation5 + $0x18] sm:$0xff]
        %v363 = vld [vmem:[#allocation5 + $0x20] sm:$0xff]
        %v364 = vld [vmem:[#allocation5 + $0x28] sm:$0xff]
        %v365 = vld [vmem:[#allocation5 + $0x30] sm:$0xff]
        %v366 = vld [vmem:[#allocation5 + $0x38] sm:$0xff]
        %v367 = vld [vmem:[#allocation5 + $0x40] sm:$0xff]
        %v368 = vld [vmem:[#allocation5 + $0x48] sm:$0xff]
        %v369 = vld [vmem:[#allocation5 + $0x50] sm:$0xff]
        %v370 = vld [vmem:[#allocation5 + $0x58] sm:$0xff]
        %v371 = vld [vmem:[#allocation5 + $0x60] sm:$0xff]
        %v372 = vld [vmem:[#allocation5 + $0x68] sm:$0xff]
        %v373 = vld [vmem:[#allocation5 + $0x70] sm:$0xff]
        %v374 = vld [vmem:[#allocation5 + $0x78] sm:$0xff]
        %v375 = vld [vmem:[#allocation5 + $0x80] sm:$0xff]
        %v376 = vld [vmem:[#allocation5 + $0x88] sm:$0xff]
        %v377 = vld [vmem:[#allocation5 + $0x90] sm:$0xff]
        %v378 = vld [vmem:[#allocation5 + $0x98] sm:$0xff]
        %v379 = vld [vmem:[#allocation5 + $0xa0] sm:$0xff]
        %v380 = vld [vmem:[#allocation5 + $0xa8] sm:$0xff]
        %v381 = vld [vmem:[#allocation5 + $0xb0] sm:$0xff]
        %v382 = vld [vmem:[#allocation5 + $0xb8] sm:$0xff]
        %v383 = vld [vmem:[#allocation5 + $0xc0] sm:$0xff]
        %v384 = vld [vmem:[#allocation5 + $0xc8] sm:$0xff]
        %v385 = vld [vmem:[#allocation5 + $0xd0] sm:$0xff]
        %v386 = vld [vmem:[#allocation5 + $0xd8] sm:$0xff]
        %v387 = vld [vmem:[#allocation5 + $0xe0] sm:$0xff]
        %v388 = vld [vmem:[#allocation5 + $0xe8] sm:$0xff]
        %v389 = vld [vmem:[#allocation5 + $0xf0] sm:$0xff]
        %v390 = vld [vmem:[#allocation5 + $0xf8] sm:$0xff]
        %391 = vmatprep.subr.mxu0 %v360
        %392 = vmatpush1.msra.mxu0 %v359
        %393 = vmatprep.subr.mxu0 %v362
        %394 = vmatpush1.msra.mxu0 %v361
        %395 = vmatprep.subr.mxu0 %v364
        %396 = vmatpush1.msra.mxu0 %v363
        %397 = vmatprep.subr.mxu0 %v366
        %398 = vmatpush1.msra.mxu0 %v365
        %399 = vmatprep.subr.mxu0 %v368
        %400 = vmatpush1.msra.mxu0 %v367
        %401 = vmatprep.subr.mxu0 %v370
        %402 = vmatpush1.msra.mxu0 %v369
        %403 = vmatprep.subr.mxu0 %v372
        %404 = vmatpush1.msra.mxu0 %v371
        %405 = vmatprep.subr.mxu0 %v374
        %406 = vmatpush1.msra.mxu0 %v373
        %407 = vmatprep.subr.mxu0 %v376
        %408 = vmatpush1.msra.mxu0 %v375
        %409 = vmatprep.subr.mxu0 %v378
        %410 = vmatpush1.msra.mxu0 %v377
        %411 = vmatprep.subr.mxu0 %v380
        %412 = vmatpush1.msra.mxu0 %v379
        %413 = vmatprep.subr.mxu0 %v382
        %414 = vmatpush1.msra.mxu0 %v381
        %415 = vmatprep.subr.mxu0 %v384
        %416 = vmatpush1.msra.mxu0 %v383
        %417 = vmatprep.subr.mxu0 %v386
        %418 = vmatpush1.msra.mxu0 %v385
        %419 = vmatprep.subr.mxu0 %v388
        %420 = vmatpush1.msra.mxu0 %v387
        %421 = vmatprep.subr.mxu0 %v390
        %422 = vmatpush1.msra.mxu0 %v389
        %423 = vmatprep.subr.mxu0 0.0
        %424 = vmatpush1.msra.mxu0 0.0
        %425 = vmatprep.subr.mxu0 0.0
        %426 = vmatpush1.msra.mxu0 0.0
        %427 = vmatprep.subr.mxu0 0.0
        %428 = vmatpush1.msra.mxu0 0.0
        %429 = vmatprep.subr.mxu0 0.0
        %430 = vmatpush1.msra.mxu0 0.0
        %431 = vmatprep.subr.mxu0 0.0
        %432 = vmatpush1.msra.mxu0 0.0
        %433 = vmatprep.subr.mxu0 0.0
        %434 = vmatpush1.msra.mxu0 0.0
        %435 = vmatprep.subr.mxu0 0.0
        %436 = vmatpush1.msra.mxu0 0.0
        %437 = vmatprep.subr.mxu0 0.0
        %438 = vmatpush1.msra.mxu0 0.0
        %439 = vmatprep.subr.mxu0 0.0
        %440 = vmatpush1.msra.mxu0 0.0
        %441 = vmatprep.subr.mxu0 0.0
        %442 = vmatpush1.msra.mxu0 0.0
        %443 = vmatprep.subr.mxu0 0.0
        %444 = vmatpush1.msra.mxu0 0.0
        %445 = vmatprep.subr.mxu0 0.0
        %446 = vmatpush1.msra.mxu0 0.0
        %447 = vmatprep.subr.mxu0 0.0
        %448 = vmatpush1.msra.mxu0 0.0
        %449 = vmatprep.subr.mxu0 0.0
        %450 = vmatpush1.msra.mxu0 0.0
        %451 = vmatprep.subr.mxu0 0.0
        %452 = vmatpush1.msra.mxu0 0.0
        %453 = vmatprep.subr.mxu0 0.0
        %454 = vmatpush1.msra.mxu0 0.0
        %455 = vmatprep.mubr.f32.mxu0 0.0
        %456 = vmatmul.mubr.f32.gmra.mrb[0].mxu0 %v351
        %v457 = vpop.f32.mrb[0].mxu0
        %v458 = vadd.f32 0.0, %v457
        %v459 = vpop.f32.mrb[0].mxu0
        %v460 = vadd.f32 0.0, %v459
        %461 = vmatprep.mubr.f32.mxu0 0.0
        %462 = vmatmul.mubr.f32.gmra.mrb[0].mxu0 %v356
        %v463 = vpop.f32.mrb[0].mxu0
        %v464 = vadd.f32 0.0, %v463
        %v465 = vpop.f32.mrb[0].mxu0
        %v466 = vadd.f32 0.0, %v465
        %467 = vdwg.mxu0
        %v468 = vld [vmem:[%s3] sm:$0xff]
        %v469 = vld [vmem:[%s3 + $0x8] sm:$0xff]
        %v470 = vadd.f32 %v458, %v468
        %v471 = vadd.f32 %v460, %v469
        %v472 = vadd.f32 %v464, %v468
        %v473 = vadd.f32 %v466, %v469
        %474 = vst [vmem:[%s221] sm:$0xff] %v470
        %475 = vst [vmem:[%s221 + $0x8] sm:$0xff] %v471
        %476 = vst [vmem:[%s221 + $0x10] sm:$0xff] %v472
        %477 = vst [vmem:[%s221 + $0x18] sm:$0xff] %v473
        %s478 = sand.u32 %s117, 1
        %s479 = scalar_lea.sflag [#allocation4], %s478
        %s480 = sand.u32 %s117, 1
        %s481 = smul.addr %s480, 32
        %s482 = scalar_lea.vmem [#allocation7], %s481
        // Predicated region
        $region45: #{tpu_custom_call.1} parent=35 // pred_check
          %p483 = pneg %p127
        $region46: #{tpu_custom_call.1} parent=35 // pred_check_branch
          %485 = sbr.rel (%p483) target = $region48
        $region47: #{tpu_custom_call.1} parent=35 // pred_region
          %s486 = smul.u32 2, %s20
          %s488 = ssub.s32 512, 512
          %489 = vsyncadd %s479, %s488
          %s490 = smul.addr %s486, 2
          %s491 = smul.addr %s490, 128
          %s492 = scalar_lea.hbm %s4, %s491
          %s493 = sshll.u32 %s482, 4
          %s494 = int_to_ptr.vmem [resolvable:$true] %s493
          %499 = dma.vmem_to_hbm [thread:$0]  %s494, 512, %s492, %s479, 256, 256, 16
        $region48: #{tpu_custom_call.1} parent=35 // pred_fallthru
          _
      $region36: #{tpu_custom_call.1} parent=5 // pred_fallthru
        _
      %p500 = scmp.le.s32.totalorder 2, %s15
      // Predicated region
      $region49: #{tpu_custom_call.1} parent=5 // pred_check
        %p501 = pneg %p500
      $region50: #{tpu_custom_call.1} parent=5 // pred_check_branch
        %503 = sbr.rel (%p501) target = $region52
      $region51: #{tpu_custom_call.1} parent=5 // pred_region
        %s504 = ssub.s32 %s15, 2
        // Predicated region
        $region53: #{tpu_custom_call.1} parent=51 // pred_check
          %p505 = pneg %p133
        $region54: #{tpu_custom_call.1} parent=51 // pred_check_branch
          %507 = sbr.rel (%p505) target = $region56
        $region55: #{tpu_custom_call.1} parent=51 // pred_region
          %s508 = sand.u32 %s118, 1
          %s509 = scalar_lea.sflag [#allocation4], %s508
          %s510 = sand.u32 %s118, 1
          %s511 = smul.addr %s510, 32
          %s512 = scalar_lea.vmem [#allocation7], %s511
          %513 = dma.done %s509, 512
        $region56: #{tpu_custom_call.1} parent=51 // pred_fallthru
          _
      $region52: #{tpu_custom_call.1} parent=5 // pred_fallthru
        _
    $region6: #{tpu_custom_call.1} parent=1 // loop_footer
      %s19 = sadd.s32 1, %s15
    $region7: #{tpu_custom_call.1} parent=1 // loop_footer_branch
      %14 = sbr.rel target = $region3
    $region8: #{tpu_custom_call.1} parent=1 // loop_exit
      _
    %514 = vsyncpa [#allocation3], 1
    %s515 = scalar_lea.sflag [#allocation3], 1
    %516 = vsyncpa %s515, 1
    %517 = vsyncpa [#allocation6], 1
    %518 = vsyncpa [#allocation4], 1
    %s519 = scalar_lea.sflag [#allocation4], 1
    %520 = vsyncpa %s519, 1

</llo_original>
